<compile_context>
chip_gen: v7x
topology: tpu7x:2x2x1
jax: 0.10.0
libtpu: 0.0.40
codegen_flags: <defaults>
</compile_context>

<pallas_src>
import functools

import jax
import jax.numpy as jnp
import numpy as np
from jax.experimental import pallas as pl
from jax.experimental.pallas import tpu as pltpu

MAX_TILE_M = 512  # sweep-able; 512-row tiles reach ~85% of HBM roofline while
                  # keeping the per-step VMEM footprint at a few hundred KiB.


def _choose_tile_m(batch):
    """Pick the batch tile.

    - tiny batches (<=16): one full-extent block (no padding needed).
    - otherwise: ~half the batch rounded up to a sublane multiple, capped at
      MAX_TILE_M, so there are always >=2 grid steps (keeps both v7x
      TensorCores busy) and large batches still get big tiles.
    """
    if batch <= 16:
        return batch
    half = -(-batch // 2)                 # ceil(batch / 2)
    half8 = ((half + 7) // 8) * 8         # round up to sublane multiple
    return min(MAX_TILE_M, half8)


def dqn_mlp_kernel(x_ref, w1_ref, w2_ref, w3_ref, w4_ref, b_ref, out_ref, *,
                   n_actions):
    # x: (TILE_M, in_dims) f32 -> cast to bf16 in-kernel (rides a VPU slot).
    # weights bf16; biases packed f32 (8, 256):
    #   row 0 -> b1[:128], row 1 -> b2[:256], row 2 -> b3[:128], row 3 -> b4[:128]
    x = x_ref[...].astype(jnp.bfloat16)

    b1 = b_ref[0:1, 0:128]
    b2 = b_ref[1:2, :]
    b3 = b_ref[2:3, 0:128]
    b4 = b_ref[3:4, 0:128]

    # fc1 + ReLU (bf16 x bf16 -> f32 accumulate; elementwise math stays f32)
    h1 = jnp.dot(x, w1_ref[...], preferred_element_type=jnp.float32) + b1
    h1 = jnp.maximum(h1, 0.0).astype(jnp.bfloat16)

    # fc2 + ReLU
    h2 = jnp.dot(h1, w2_ref[...], preferred_element_type=jnp.float32) + b2
    h2 = jnp.maximum(h2, 0.0).astype(jnp.bfloat16)

    # fc3 + ReLU
    h3 = jnp.dot(h2, w3_ref[...], preferred_element_type=jnp.float32) + b3
    h3 = jnp.maximum(h3, 0.0).astype(jnp.bfloat16)

    # fc4 (no activation): MXU dot on the 128-col padded weight, then store
    # only the real n_actions columns (narrow output, minimal HBM writeback).
    q = jnp.dot(h3, w4_ref[...], preferred_element_type=jnp.float32) + b4
    out_ref[...] = q[:, :n_actions].astype(out_ref.dtype)


@functools.partial(jax.jit, static_argnames=("n_actions", "tile_m"))
def _dqn_pallas(state, w1, w2, w3, w4p, b_packed, *, n_actions, tile_m):
    batch, in_dims = state.shape
    grid = (pl.cdiv(batch, tile_m),)

    flops = 2 * batch * (in_dims * 128 + 128 * 256 + 256 * 128 + 128 * 128)
    bytes_accessed = (state.size * 4                                   # f32 in
                      + (w1.size + w2.size + w3.size + w4p.size) * 2   # bf16 w
                      + b_packed.size * 4                              # f32 b
                      + batch * n_actions * 4)                         # f32 out

    kernel = functools.partial(dqn_mlp_kernel, n_actions=n_actions)

    return pl.pallas_call(
        kernel,
        out_shape=jax.ShapeDtypeStruct((batch, n_actions), jnp.float32),
        grid_spec=pltpu.PrefetchScalarGridSpec(
            num_scalar_prefetch=0,
            grid=grid,
            in_specs=[
                # state: tiled over batch (ragged final block handled by Pallas)
                pl.BlockSpec((tile_m, in_dims), lambda i: (i, 0)),
                # weights / packed biases: pinned to block (0,0) -> VMEM-resident
                pl.BlockSpec((in_dims, 128), lambda i: (0, 0)),
                pl.BlockSpec((128, 256), lambda i: (0, 0)),
                pl.BlockSpec((256, 128), lambda i: (0, 0)),
                pl.BlockSpec((128, 128), lambda i: (0, 0)),
                pl.BlockSpec((8, 256), lambda i: (0, 0)),
            ],
            out_specs=pl.BlockSpec((tile_m, n_actions), lambda i: (i, 0)),
        ),
        compiler_params=pltpu.CompilerParams(
            dimension_semantics=("parallel",)),
        cost_estimate=pl.CostEstimate(
            flops=flops, transcendentals=0, bytes_accessed=bytes_accessed),
    )(state, w1, w2, w3, w4p, b_packed)


def linear_dqn_forward(state, params):
    """Forward pass of LinearDeepQNetwork as a single fused Pallas kernel.

    state: [batch, input_dims] float32
    returns: [batch, n_actions] float32 Q-values
    """
    batch, _ = state.shape
    tile_m = _choose_tile_m(batch)
    return _dqn_pallas(state, params["w1"], params["w2"], params["w3"],
                       params["w4p"], params["b_packed"],
                       n_actions=params["n_actions"], tile_m=tile_m)


def init_params(key, input_dims, n_actions):
    """Init matching nn.Linear's default U(-1/sqrt(fan_in), 1/sqrt(fan_in)).

    Weights stored [in, out] in bf16; fc4 zero-padded to 128 output columns
    (MXU-friendly dot shape; only real columns are stored); biases packed into
    a single (8, 256) f32 array (one DMA instead of four).
    """
    dims = [input_dims, 128, 256, 128, n_actions]
    ws, bs = [], []
    for i in range(4):
        fan_in, fan_out = dims[i], dims[i + 1]
        key, kw, kb = jax.random.split(key, 3)
        bound = float(1.0 / np.sqrt(fan_in))
        ws.append(jax.random.uniform(kw, (fan_in, fan_out), jnp.float32,
                                     -bound, bound))
        bs.append(jax.random.uniform(kb, (fan_out,), jnp.float32,
                                     -bound, bound))

    w4p = jnp.zeros((128, 128), jnp.float32).at[:, :n_actions].set(ws[3])

    b_packed = jnp.zeros((8, 256), jnp.float32)
    b_packed = b_packed.at[0, :128].set(bs[0])
    b_packed = b_packed.at[1, :256].set(bs[1])
    b_packed = b_packed.at[2, :128].set(bs[2])
    b_packed = b_packed.at[3, :n_actions].set(bs[3])

    return {
        "w1": ws[0].astype(jnp.bfloat16),
        "w2": ws[1].astype(jnp.bfloat16),
        "w3": ws[2].astype(jnp.bfloat16),
        "w4p": w4p.astype(jnp.bfloat16),
        "b_packed": b_packed,
        "n_actions": n_actions,
    }


def reference_forward(state, params):
    """Plain-JAX reference using the same (bf16-stored) weights in f32 math.

    Note: the kernel additionally keeps inter-layer activations in bf16 (f32
    MXU accumulation) — a deliberate precision trade covered by the tolerance.
    """
    w1 = params["w1"].astype(jnp.float32)
    w2 = params["w2"].astype(jnp.float32)
    w3 = params["w3"].astype(jnp.float32)
    w4 = params["w4p"].astype(jnp.float32)
    b = params["b_packed"]
    h = jnp.maximum(state @ w1 + b[0, :128], 0.0)
    h = jnp.maximum(h @ w2 + b[1, :256], 0.0)
    h = jnp.maximum(h @ w3 + b[2, :128], 0.0)
    out = h @ w4 + b[3, :128]
    return out[:, :params["n_actions"]]


if __name__ == "__main__":
    # TODO(synk): Adam optimizer / MSELoss training step from the PyTorch module
    # are not part of the forward pass and are not implemented here.
    key = jax.random.PRNGKey(0)
    key, k_state, k_big = jax.random.split(key, 3)

    input_dims = 8   # small observation vector
    n_actions = 4
    params = init_params(key, input_dims, n_actions)

    # Small batch (single full-extent block).
    batch = 2
    state = jax.random.normal(k_state, (batch, input_dims), jnp.float32)
    actions = jax.block_until_ready(linear_dqn_forward(state, params))
    ref = reference_forward(state, params)
    assert actions.shape == (batch, n_actions)
    assert jnp.allclose(actions, ref, atol=5e-2, rtol=5e-2), (
        f"max abs err {jnp.max(jnp.abs(actions - ref))}")

    # Larger, non-multiple-of-tile batch: exercises multi-tile grid plus
    # Pallas ragged-final-block masking (no external pad/slice).
    big_batch = 100
    big_state = jax.random.normal(k_big, (big_batch, input_dims), jnp.float32)
    big_actions = jax.block_until_ready(linear_dqn_forward(big_state, params))
    big_ref = reference_forward(big_state, params)
    assert big_actions.shape == (big_batch, n_actions)
    assert jnp.allclose(big_actions, big_ref, atol=5e-2, rtol=5e-2), (
        f"max abs err {jnp.max(jnp.abs(big_actions - big_ref))}")

    print("KERNEL_OK")
</pallas_src>

<mosaic_0001>
module attributes {stable_mosaic.version = 11 : i64} {
  func.func @dqn_mlp_kernel(%arg0: i32, %arg1: memref<2x8xf32, #tpu.memory_space<vmem>>, %arg2: memref<8x128xbf16, #tpu.memory_space<vmem>>, %arg3: memref<128x256xbf16, #tpu.memory_space<vmem>>, %arg4: memref<256x128xbf16, #tpu.memory_space<vmem>>, %arg5: memref<128x128xbf16, #tpu.memory_space<vmem>>, %arg6: memref<8x256xf32, #tpu.memory_space<vmem>>, %arg7: memref<2x4xf32, #tpu.memory_space<vmem>>) attributes {dimension_semantics = [#tpu.dimension_semantics<parallel>], iteration_bounds = array<i64: 1>, scalar_prefetch = 0 : i64, scratch_operands = 0 : i64, tpu.core_type = #tpu.core_type<tc>, window_params = [{transform_indices = @transform_0, window_bounds = array<i64: 2, 8>}, {pipeline_mode = #tpu.pipeline_mode<synchronous>, transform_indices = @transform_1, window_bounds = array<i64: 8, 128>}, {pipeline_mode = #tpu.pipeline_mode<synchronous>, transform_indices = @transform_2, window_bounds = array<i64: 128, 256>}, {pipeline_mode = #tpu.pipeline_mode<synchronous>, transform_indices = @transform_3, window_bounds = array<i64: 256, 128>}, {pipeline_mode = #tpu.pipeline_mode<synchronous>, transform_indices = @transform_4, window_bounds = array<i64: 128, 128>}, {pipeline_mode = #tpu.pipeline_mode<synchronous>, transform_indices = @transform_5, window_bounds = array<i64: 8, 256>}, {transform_indices = @transform_6, window_bounds = array<i64: 2, 4>}]} {
    %c0 = arith.constant 0 : index
    %c0_0 = arith.constant 0 : index
    %0 = vector.load %arg1[%c0, %c0_0] : memref<2x8xf32, #tpu.memory_space<vmem>>, vector<2x8xf32>
    %1 = arith.truncf %0 : vector<2x8xf32> to vector<2x8xbf16>
    %c0_1 = arith.constant 0 : index
    %c0_2 = arith.constant 0 : index
    %2 = vector.load %arg6[%c0_1, %c0_2] : memref<8x256xf32, #tpu.memory_space<vmem>>, vector<1x128xf32>
    %c1 = arith.constant 1 : index
    %c0_3 = arith.constant 0 : index
    %3 = vector.load %arg6[%c1, %c0_3] : memref<8x256xf32, #tpu.memory_space<vmem>>, vector<1x256xf32>
    %c2 = arith.constant 2 : index
    %c0_4 = arith.constant 0 : index
    %4 = vector.load %arg6[%c2, %c0_4] : memref<8x256xf32, #tpu.memory_space<vmem>>, vector<1x128xf32>
    %c3 = arith.constant 3 : index
    %c0_5 = arith.constant 0 : index
    %5 = vector.load %arg6[%c3, %c0_5] : memref<8x256xf32, #tpu.memory_space<vmem>>, vector<1x128xf32>
    %c0_6 = arith.constant 0 : index
    %c0_7 = arith.constant 0 : index
    %6 = vector.load %arg2[%c0_6, %c0_7] : memref<8x128xbf16, #tpu.memory_space<vmem>>, vector<8x128xbf16>
    %cst = arith.constant dense<0.000000e+00> : vector<2x128xf32>
    %7 = tpu.matmul %1, %6, %cst {dimension_numbers = #tpu.dot_dimension_numbers<[1], [0], [0], [1], [0, 0, 1, 1], [], []>} : vector<2x8xbf16>, vector<8x128xbf16>, vector<2x128xf32> -> vector<2x128xf32>
    %8 = vector.broadcast %2 : vector<1x128xf32> to vector<2x128xf32>
    %9 = arith.addf %7, %8 : vector<2x128xf32>
    %cst_8 = arith.constant 0.000000e+00 : f32
    %10 = vector.broadcast %cst_8 : f32 to vector<2x128xf32>
    %11 = arith.maximumf %9, %10 : vector<2x128xf32>
    %12 = arith.truncf %11 : vector<2x128xf32> to vector<2x128xbf16>
    %c0_9 = arith.constant 0 : index
    %c0_10 = arith.constant 0 : index
    %13 = vector.load %arg3[%c0_9, %c0_10] : memref<128x256xbf16, #tpu.memory_space<vmem>>, vector<128x256xbf16>
    %cst_11 = arith.constant dense<0.000000e+00> : vector<2x256xf32>
    %14 = tpu.matmul %12, %13, %cst_11 {dimension_numbers = #tpu.dot_dimension_numbers<[1], [0], [0], [1], [0, 0, 1, 1], [], []>} : vector<2x128xbf16>, vector<128x256xbf16>, vector<2x256xf32> -> vector<2x256xf32>
    %15 = vector.broadcast %3 : vector<1x256xf32> to vector<2x256xf32>
    %16 = arith.addf %14, %15 : vector<2x256xf32>
    %cst_12 = arith.constant 0.000000e+00 : f32
    %17 = vector.broadcast %cst_12 : f32 to vector<2x256xf32>
    %18 = arith.maximumf %16, %17 : vector<2x256xf32>
    %19 = arith.truncf %18 : vector<2x256xf32> to vector<2x256xbf16>
    %c0_13 = arith.constant 0 : index
    %c0_14 = arith.constant 0 : index
    %20 = vector.load %arg4[%c0_13, %c0_14] : memref<256x128xbf16, #tpu.memory_space<vmem>>, vector<256x128xbf16>
    %cst_15 = arith.constant dense<0.000000e+00> : vector<2x128xf32>
    %21 = tpu.matmul %19, %20, %cst_15 {dimension_numbers = #tpu.dot_dimension_numbers<[1], [0], [0], [1], [0, 0, 1, 1], [], []>} : vector<2x256xbf16>, vector<256x128xbf16>, vector<2x128xf32> -> vector<2x128xf32>
    %22 = vector.broadcast %4 : vector<1x128xf32> to vector<2x128xf32>
    %23 = arith.addf %21, %22 : vector<2x128xf32>
    %cst_16 = arith.constant 0.000000e+00 : f32
    %24 = vector.broadcast %cst_16 : f32 to vector<2x128xf32>
    %25 = arith.maximumf %23, %24 : vector<2x128xf32>
    %26 = arith.truncf %25 : vector<2x128xf32> to vector<2x128xbf16>
    %c0_17 = arith.constant 0 : index
    %c0_18 = arith.constant 0 : index
    %27 = vector.load %arg5[%c0_17, %c0_18] : memref<128x128xbf16, #tpu.memory_space<vmem>>, vector<128x128xbf16>
    %cst_19 = arith.constant dense<0.000000e+00> : vector<2x128xf32>
    %28 = tpu.matmul %26, %27, %cst_19 {dimension_numbers = #tpu.dot_dimension_numbers<[1], [0], [0], [1], [0, 0, 1, 1], [], []>} : vector<2x128xbf16>, vector<128x128xbf16>, vector<2x128xf32> -> vector<2x128xf32>
    %29 = vector.broadcast %5 : vector<1x128xf32> to vector<2x128xf32>
    %30 = arith.addf %28, %29 : vector<2x128xf32>
    %31 = vector.extract_strided_slice %30 {offsets = [0, 0], sizes = [2, 4], strides = [1, 1]} : vector<2x128xf32> to vector<2x4xf32>
    %c0_20 = arith.constant 0 : index
    %c0_21 = arith.constant 0 : index
    %32 = vector.load %arg7[%c0_20, %c0_21] : memref<2x4xf32, #tpu.memory_space<vmem>>, vector<2x4xf32>
    tpu.vector_store %arg7[%c0_20, %c0_21], %31 {strides = array<i32>} : memref<2x4xf32, #tpu.memory_space<vmem>>, vector<2x4xf32>,
    return
  }
  func.func @transform_0(%arg0: i32) -> (i32, i32) {
    %c0_i32 = arith.constant 0 : i32
    %c0_i32_0 = arith.constant 0 : i32
    return %arg0, %c0_i32 : i32, i32
  }
  func.func @transform_1(%arg0: i32) -> (i32, i32) {
    %c0_i32 = arith.constant 0 : i32
    %c0_i32_0 = arith.constant 0 : i32
    %c0_i32_1 = arith.constant 0 : i32
    return %c0_i32, %c0_i32_0 : i32, i32
  }
  func.func @transform_2(%arg0: i32) -> (i32, i32) {
    %c0_i32 = arith.constant 0 : i32
    %c0_i32_0 = arith.constant 0 : i32
    %c0_i32_1 = arith.constant 0 : i32
    return %c0_i32, %c0_i32_0 : i32, i32
  }
  func.func @transform_3(%arg0: i32) -> (i32, i32) {
    %c0_i32 = arith.constant 0 : i32
    %c0_i32_0 = arith.constant 0 : i32
    %c0_i32_1 = arith.constant 0 : i32
    return %c0_i32, %c0_i32_0 : i32, i32
  }
  func.func @transform_4(%arg0: i32) -> (i32, i32) {
    %c0_i32 = arith.constant 0 : i32
    %c0_i32_0 = arith.constant 0 : i32
    %c0_i32_1 = arith.constant 0 : i32
    return %c0_i32, %c0_i32_0 : i32, i32
  }
  func.func @transform_5(%arg0: i32) -> (i32, i32) {
    %c0_i32 = arith.constant 0 : i32
    %c0_i32_0 = arith.constant 0 : i32
    %c0_i32_1 = arith.constant 0 : i32
    return %c0_i32, %c0_i32_0 : i32, i32
  }
  func.func @transform_6(%arg0: i32) -> (i32, i32) {
    %c0_i32 = arith.constant 0 : i32
    %c0_i32_0 = arith.constant 0 : i32
    return %arg0, %c0_i32 : i32, i32
  }
}

</mosaic_0001>

<llo_original>
// kernel: _dqn_pallas.1
$region0: #{_dqn_pallas.1}
  #allocation0 [shape = 'u32[]', space=smem, size = 0x4, offset = 0x4, fixed_abs, tag = 'smem constant byte address 0x4 - core index']
  #allocation1 [shape = 'u32[144,128]{1,0:T(1,128)}', space=vmem, size = 0x12000, scoped, tag = 'internal scratch']
  %s0 = inlined_call_operand.hbm [shape: f32[2,8], index: 0, kind: input, shape index: {}]
  %s1 = inlined_call_operand.hbm [shape: bf16[8,128], index: 1, kind: input, shape index: {}]
  %s2 = inlined_call_operand.hbm [shape: bf16[128,256], index: 2, kind: input, shape index: {}]
  %s3 = inlined_call_operand.hbm [shape: bf16[256,128], index: 3, kind: input, shape index: {}]
  %s4 = inlined_call_operand.hbm [shape: bf16[128,128], index: 4, kind: input, shape index: {}]
  %s5 = inlined_call_operand.vmem [shape: f32[8,256], index: 5, kind: input, shape index: {}]
  %s6 = inlined_call_operand.hbm [shape: f32[2,4], index: 6, kind: output, shape index: {}]
  %s7 = sld [smem:[#allocation0]]
  $region54: #{_dqn_pallas.1} parent=0
    _
  %s9 = ssub.s32 1, %s7
  %s10 = scalar_select 0, %s9, %s7
  $region1: #{_dqn_pallas.1} parent=0
    #allocation2 [shape = 'u8[1024]{0}', space=vmem, size = 0x400, scoped, tag = 'input window, operand 0, single buffered']
    #allocation3 [shape = 's32[1]{0}', space=sflag, size = 0x4, scoped, tag = 'scoped memory for _dqn_pallas.1']
    #allocation4 [shape = 's32[1]{0}', space=sflag, size = 0x4, scoped, tag = 'scoped memory for _dqn_pallas.1']
    #allocation5 [shape = 'u8[2048]{0}', space=vmem, size = 0x800, scoped, tag = 'input window, operand 1, single buffered']
    #allocation6 [shape = 's32[1]{0}', space=sflag, size = 0x4, scoped, tag = 'scoped memory for _dqn_pallas.1']
    #allocation7 [shape = 'u8[65536]{0}', space=vmem, size = 0x10000, scoped, tag = 'input window, operand 2, single buffered']
    #allocation8 [shape = 'u8[65536]{0}', space=vmem, size = 0x10000, scoped, tag = 'input window, operand 3, single buffered']
    #allocation9 [shape = 's32[1]{0}', space=sflag, size = 0x4, scoped, tag = 'scoped memory for _dqn_pallas.1']
    #allocation10 [shape = 'u8[32768]{0}', space=vmem, size = 0x8000, scoped, tag = 'input window, operand 4, single buffered']
    #allocation11 [shape = 'u8[1024]{0}', space=vmem, size = 0x400, scoped, tag = 'output window, operand 0, single buffered']
    %11 = vsyncpa [#allocation3], 0
    %12 = vsyncpa [#allocation6], 0
    %13 = vsyncpa [#allocation9], 0
    %14 = vsyncpa [#allocation4], 0
    // Predicated region
    $region2: #{_dqn_pallas.1} parent=1 // pred_check
      _
    $region3: #{_dqn_pallas.1} parent=1 // pred_check_branch
      %16 = sbr.rel (0) target = $region5
    $region4: #{_dqn_pallas.1} parent=1 // pred_region
      %s18 = ssub.s32 32, 32
      %19 = vsyncadd [#allocation3], %s18
      %s21 = sshll.u32 [#allocation2], 4
      %s22 = int_to_ptr.vmem [resolvable:$true] %s21
      %24 = dma.hbm_to_vmem [thread:$0]  %s0, 32, %s22, [#allocation3]
    $region5: #{_dqn_pallas.1} parent=1 // pred_fallthru
      _
    // Predicated region
    $region6: #{_dqn_pallas.1} parent=1 // pred_check
      _
    $region7: #{_dqn_pallas.1} parent=1 // pred_check_branch
      %26 = sbr.rel (0) target = $region9
    $region8: #{_dqn_pallas.1} parent=1 // pred_region
      %s28 = ssub.s32 64, 64
      %29 = vsyncadd [#allocation6], %s28
      %s31 = sshll.u32 [#allocation5], 4
      %s32 = int_to_ptr.vmem [resolvable:$true] %s31
      %34 = dma.hbm_to_vmem [thread:$0]  %s1, 64, %s32, [#allocation6]
    $region9: #{_dqn_pallas.1} parent=1 // pred_fallthru
      _
    // Predicated region
    $region10: #{_dqn_pallas.1} parent=1 // pred_check
      _
    $region11: #{_dqn_pallas.1} parent=1 // pred_check_branch
      %36 = sbr.rel (0) target = $region13
    $region12: #{_dqn_pallas.1} parent=1 // pred_region
      %s38 = ssub.s32 2048, 2048
      %39 = vsyncadd [#allocation6], %s38
      %s40 = sshll.u32 [#allocation7], 4
      %s41 = int_to_ptr.vmem [resolvable:$true] %s40
      %46 = dma.hbm_to_vmem [thread:$0]  %s2, 2048, %s41, [#allocation6], 128, 128, 8
    $region13: #{_dqn_pallas.1} parent=1 // pred_fallthru
      _
    // Predicated region
    $region14: #{_dqn_pallas.1} parent=1 // pred_check
      _
    $region15: #{_dqn_pallas.1} parent=1 // pred_check_branch
      %48 = sbr.rel (0) target = $region17
    $region16: #{_dqn_pallas.1} parent=1 // pred_region
      %s50 = ssub.s32 2048, 2048
      %51 = vsyncadd [#allocation9], %s50
      %s52 = sshll.u32 [#allocation8], 4
      %s53 = int_to_ptr.vmem [resolvable:$true] %s52
      %58 = dma.hbm_to_vmem [thread:$0]  %s3, 2048, %s53, [#allocation9], 64, 64, 4
    $region17: #{_dqn_pallas.1} parent=1 // pred_fallthru
      _
    // Predicated region
    $region18: #{_dqn_pallas.1} parent=1 // pred_check
      _
    $region19: #{_dqn_pallas.1} parent=1 // pred_check_branch
      %60 = sbr.rel (0) target = $region21
    $region20: #{_dqn_pallas.1} parent=1 // pred_region
      %s62 = ssub.s32 1024, 1024
      %63 = vsyncadd [#allocation9], %s62
      %s64 = sshll.u32 [#allocation10], 4
      %s65 = int_to_ptr.vmem [resolvable:$true] %s64
      %70 = dma.hbm_to_vmem [thread:$0]  %s4, 1024, %s65, [#allocation9], 64, 64, 4
    $region21: #{_dqn_pallas.1} parent=1 // pred_fallthru
      _
    // Predicated region
    $region22: #{_dqn_pallas.1} parent=1 // pred_check
      _
    $region23: #{_dqn_pallas.1} parent=1 // pred_check_branch
      %72 = sbr.rel (0) target = $region25
    $region24: #{_dqn_pallas.1} parent=1 // pred_region
      _
    $region25: #{_dqn_pallas.1} parent=1 // pred_fallthru
      _
    // Predicated region
    $region26: #{_dqn_pallas.1} parent=1 // pred_check
      _
    $region27: #{_dqn_pallas.1} parent=1 // pred_check_branch
      %74 = sbr.rel (0) target = $region29
    $region28: #{_dqn_pallas.1} parent=1 // pred_region
      %75 = dma.done [#allocation3], 32
    $region29: #{_dqn_pallas.1} parent=1 // pred_fallthru
      _
    // Predicated region
    $region30: #{_dqn_pallas.1} parent=1 // pred_check
      _
    $region31: #{_dqn_pallas.1} parent=1 // pred_check_branch
      %77 = sbr.rel (0) target = $region33
    $region32: #{_dqn_pallas.1} parent=1 // pred_region
      %78 = dma.done [#allocation6], 64
    $region33: #{_dqn_pallas.1} parent=1 // pred_fallthru
      _
    // Predicated region
    $region34: #{_dqn_pallas.1} parent=1 // pred_check
      _
    $region35: #{_dqn_pallas.1} parent=1 // pred_check_branch
      %80 = sbr.rel (0) target = $region37
    $region36: #{_dqn_pallas.1} parent=1 // pred_region
      %81 = dma.done [#allocation6], 2048
    $region37: #{_dqn_pallas.1} parent=1 // pred_fallthru
      _
    // Predicated region
    $region38: #{_dqn_pallas.1} parent=1 // pred_check
      _
    $region39: #{_dqn_pallas.1} parent=1 // pred_check_branch
      %83 = sbr.rel (0) target = $region41
    $region40: #{_dqn_pallas.1} parent=1 // pred_region
      %84 = dma.done [#allocation9], 2048
    $region41: #{_dqn_pallas.1} parent=1 // pred_fallthru
      _
    // Predicated region
    $region42: #{_dqn_pallas.1} parent=1 // pred_check
      _
    $region43: #{_dqn_pallas.1} parent=1 // pred_check_branch
      %86 = sbr.rel (0) target = $region45
    $region44: #{_dqn_pallas.1} parent=1 // pred_region
      %87 = dma.done [#allocation9], 1024
    $region45: #{_dqn_pallas.1} parent=1 // pred_fallthru
      _
    %v89 = vld [vmem:[#allocation2] sm:$0x3]
    %v90 = vpack.c.bf16 %v89, %v89
    %v91 = vld [vmem:[%s5] ss:$0 sm:$0xff]
    %s92 = scalar_lea.vmem %s5, 1
    %v93 = vld [vmem:[%s92] ss:$8 sm:$0x3]
    %v94 = vld [vmem:[%s5 + $0x2] ss:$0 sm:$0xff]
    %v95 = vld [vmem:[%s5 + $0x3] ss:$0 sm:$0xff]
    %v96 = vld [vmem:[#allocation5] sm:$0xf]
    %vm97 = vcmask 64512
    %v99 = vsel %vm97, %v90, 0
    %vm101 = vcmask 1043456
    %v103 = vsel %vm101, %v96, 0
    %105 = vmatprep.subr.bf16.mxu0 0
    %106 = vmatpush1.bf16.msra.mxu0 %v103
    %107 = vmatprep.subr.bf16.mxu0 0
    %108 = vmatpush1.bf16.msra.mxu0 0
    %109 = vmatprep.subr.bf16.mxu0 0
    %110 = vmatpush1.bf16.msra.mxu0 0
    %111 = vmatprep.subr.bf16.mxu0 0
    %112 = vmatpush1.bf16.msra.mxu0 0
    %113 = vmatprep.subr.bf16.mxu0 0
    %114 = vmatpush1.bf16.msra.mxu0 0
    %115 = vmatprep.subr.bf16.mxu0 0
    %116 = vmatpush1.bf16.msra.mxu0 0
    %117 = vmatprep.subr.bf16.mxu0 0
    %118 = vmatpush1.bf16.msra.mxu0 0
    %119 = vmatprep.subr.bf16.mxu0 0
    %120 = vmatpush1.bf16.msra.mxu0 0
    %121 = vmatprep.subr.bf16.mxu0 0
    %122 = vmatpush1.bf16.msra.mxu0 0
    %123 = vmatprep.subr.bf16.mxu0 0
    %124 = vmatpush1.bf16.msra.mxu0 0
    %125 = vmatprep.subr.bf16.mxu0 0
    %126 = vmatpush1.bf16.msra.mxu0 0
    %127 = vmatprep.subr.bf16.mxu0 0
    %128 = vmatpush1.bf16.msra.mxu0 0
    %129 = vmatprep.subr.bf16.mxu0 0
    %130 = vmatpush1.bf16.msra.mxu0 0
    %131 = vmatprep.subr.bf16.mxu0 0
    %132 = vmatpush1.bf16.msra.mxu0 0
    %133 = vmatprep.subr.bf16.mxu0 0
    %134 = vmatpush1.bf16.msra.mxu0 0
    %135 = vmatprep.subr.bf16.mxu0 0
    %136 = vmatpush1.bf16.msra.mxu0 0
    %137 = vmatprep.mubr.bf16.mxu0 0
    %138 = vmatmul.mubr.bf16.gmra.mrb[0].mxu0 %v99
    %v139 = vpop.f32.mrb[0].mxu0
    %v140 = vadd.f32 %v91, %v139
    %v141 = vpop.f32.mrb[0].mxu0
    %v142 = vpop.f32.mrb[0].mxu0
    %v143 = vpop.f32.mrb[0].mxu0
    %144 = vdwg.mxu0
    %v145 = vmax.f32 %v140, 0.0
    %v146 = vpack.c.bf16 %v145, %v145
    %v147 = vld [vmem:[#allocation7] sm:$0xff]
    %v148 = vld [vmem:[#allocation7 + $0x8] sm:$0xff]
    %v149 = vld [vmem:[#allocation7 + $0x10] sm:$0xff]
    %v150 = vld [vmem:[#allocation7 + $0x18] sm:$0xff]
    %v151 = vld [vmem:[#allocation7 + $0x20] sm:$0xff]
    %v152 = vld [vmem:[#allocation7 + $0x28] sm:$0xff]
    %v153 = vld [vmem:[#allocation7 + $0x30] sm:$0xff]
    %v154 = vld [vmem:[#allocation7 + $0x38] sm:$0xff]
    %v155 = vld [vmem:[#allocation7 + $0x40] sm:$0xff]
    %v156 = vld [vmem:[#allocation7 + $0x48] sm:$0xff]
    %v157 = vld [vmem:[#allocation7 + $0x50] sm:$0xff]
    %v158 = vld [vmem:[#allocation7 + $0x58] sm:$0xff]
    %v159 = vld [vmem:[#allocation7 + $0x60] sm:$0xff]
    %v160 = vld [vmem:[#allocation7 + $0x68] sm:$0xff]
    %v161 = vld [vmem:[#allocation7 + $0x70] sm:$0xff]
    %v162 = vld [vmem:[#allocation7 + $0x78] sm:$0xff]
    %v164 = vlaneseq
    %v165 = vshrl.u32 %v164, 7
    %v166 = vsub.s32 0, %v165
    %v167 = vrot.slane %v93, %v166
    %v168 = vlaneseq
    %v169 = vshrl.u32 %v168, 7
    %v170 = vsub.s32 1, %v169
    %v171 = vrot.slane %v93, %v170
    %v190 = vunpack.c.l.b16 %v147
    %v191 = vunpack.c.h.b16 %v147
    %v192 = vunpack.c.l.b16 %v148
    %v193 = vunpack.c.h.b16 %v148
    %v194 = vunpack.c.l.b16 %v149
    %v195 = vunpack.c.h.b16 %v149
    %v196 = vunpack.c.l.b16 %v150
    %v197 = vunpack.c.h.b16 %v150
    %v198 = vunpack.c.l.b16 %v151
    %v199 = vunpack.c.h.b16 %v151
    %v200 = vunpack.c.l.b16 %v152
    %v201 = vunpack.c.h.b16 %v152
    %v202 = vunpack.c.l.b16 %v153
    %v203 = vunpack.c.h.b16 %v153
    %v204 = vunpack.c.l.b16 %v154
    %v205 = vunpack.c.h.b16 %v154
    %v206 = vunpack.c.l.b16 %v155
    %v207 = vunpack.c.h.b16 %v155
    %v208 = vunpack.c.l.b16 %v156
    %v209 = vunpack.c.h.b16 %v156
    %v210 = vunpack.c.l.b16 %v157
    %v211 = vunpack.c.h.b16 %v157
    %v212 = vunpack.c.l.b16 %v158
    %v213 = vunpack.c.h.b16 %v158
    %v214 = vunpack.c.l.b16 %v159
    %v215 = vunpack.c.h.b16 %v159
    %v216 = vunpack.c.l.b16 %v160
    %v217 = vunpack.c.h.b16 %v160
    %v218 = vunpack.c.l.b16 %v161
    %v219 = vunpack.c.h.b16 %v161
    %v220 = vunpack.c.l.b16 %v162
    %v221 = vunpack.c.h.b16 %v162
    %v222 = vpack.c.b16 %v192, %v190
    %v223 = vpack.c.b16 %v193, %v191
    %v224 = vpack.c.b16 %v196, %v194
    %v225 = vpack.c.b16 %v197, %v195
    %v226 = vpack.c.b16 %v200, %v198
    %v227 = vpack.c.b16 %v201, %v199
    %v228 = vpack.c.b16 %v204, %v202
    %v229 = vpack.c.b16 %v205, %v203
    %v230 = vpack.c.b16 %v208, %v206
    %v231 = vpack.c.b16 %v209, %v207
    %v232 = vpack.c.b16 %v212, %v210
    %v233 = vpack.c.b16 %v213, %v211
    %v234 = vpack.c.b16 %v216, %v214
    %v235 = vpack.c.b16 %v217, %v215
    %v236 = vpack.c.b16 %v220, %v218
    %v237 = vpack.c.b16 %v221, %v219
    %254 = vmatprep.subr.bf16.mxu0 %v223
    %255 = vmatpush1.bf16.msra.mxu0 %v222
    %256 = vmatprep.subr.bf16.mxu0 %v225
    %257 = vmatpush1.bf16.msra.mxu0 %v224
    %258 = vmatprep.subr.bf16.mxu0 %v227
    %259 = vmatpush1.bf16.msra.mxu0 %v226
    %260 = vmatprep.subr.bf16.mxu0 %v229
    %261 = vmatpush1.bf16.msra.mxu0 %v228
    %262 = vmatprep.subr.bf16.mxu0 %v231
    %263 = vmatpush1.bf16.msra.mxu0 %v230
    %264 = vmatprep.subr.bf16.mxu0 %v233
    %265 = vmatpush1.bf16.msra.mxu0 %v232
    %266 = vmatprep.subr.bf16.mxu0 %v235
    %267 = vmatpush1.bf16.msra.mxu0 %v234
    %268 = vmatprep.subr.bf16.mxu0 %v237
    %269 = vmatpush1.bf16.msra.mxu0 %v236
    %270 = vmatprep.subr.bf16.mxu0 0
    %271 = vmatpush1.bf16.msra.mxu0 0
    %272 = vmatprep.subr.bf16.mxu0 0
    %273 = vmatpush1.bf16.msra.mxu0 0
    %274 = vmatprep.subr.bf16.mxu0 0
    %275 = vmatpush1.bf16.msra.mxu0 0
    %276 = vmatprep.subr.bf16.mxu0 0
    %277 = vmatpush1.bf16.msra.mxu0 0
    %278 = vmatprep.subr.bf16.mxu0 0
    %279 = vmatpush1.bf16.msra.mxu0 0
    %280 = vmatprep.subr.bf16.mxu0 0
    %281 = vmatpush1.bf16.msra.mxu0 0
    %282 = vmatprep.subr.bf16.mxu0 0
    %283 = vmatpush1.bf16.msra.mxu0 0
    %284 = vmatprep.subr.bf16.mxu0 0
    %285 = vmatpush1.bf16.msra.mxu0 0
    %286 = vmatprep.mubr.bf16.mxu0 0
    %287 = vmatmul.mubr.bf16.gmra.mrb[0].mxu0 %v146
    %v288 = vpop.f32.mrb[0].mxu0
    %v289 = vadd.f32 %v167, %v288
    %v290 = vpop.f32.mrb[0].mxu0
    %v291 = vadd.f32 %v171, %v290
    %v292 = vpop.f32.mrb[0].mxu0
    %v293 = vpop.f32.mrb[0].mxu0
    %294 = vdwg.mxu0
    %v295 = vmax.f32 %v289, 0.0
    %v296 = vmax.f32 %v291, 0.0
    %v297 = vpack.c.bf16 %v295, %v295
    %v298 = vpack.c.bf16 %v296, %v296
    %v299 = vld [vmem:[#allocation8] sm:$0xf]
    %v300 = vld [vmem:[#allocation8 + $0x4] sm:$0xf]
    %v301 = vld [vmem:[#allocation8 + $0x8] sm:$0xf]
    %v302 = vld [vmem:[#allocation8 + $0xc] sm:$0xf]
    %v303 = vld [vmem:[#allocation8 + $0x10] sm:$0xf]
    %v304 = vld [vmem:[#allocation8 + $0x14] sm:$0xf]
    %v305 = vld [vmem:[#allocation8 + $0x18] sm:$0xf]
    %v306 = vld [vmem:[#allocation8 + $0x1c] sm:$0xf]
    %v307 = vld [vmem:[#allocation8 + $0x20] sm:$0xf]
    %v308 = vld [vmem:[#allocation8 + $0x24] sm:$0xf]
    %v309 = vld [vmem:[#allocation8 + $0x28] sm:$0xf]
    %v310 = vld [vmem:[#allocation8 + $0x2c] sm:$0xf]
    %v311 = vld [vmem:[#allocation8 + $0x30] sm:$0xf]
    %v312 = vld [vmem:[#allocation8 + $0x34] sm:$0xf]
    %v313 = vld [vmem:[#allocation8 + $0x38] sm:$0xf]
    %v314 = vld [vmem:[#allocation8 + $0x3c] sm:$0xf]
    %v315 = vld [vmem:[#allocation8 + $0x40] sm:$0xf]
    %v316 = vld [vmem:[#allocation8 + $0x44] sm:$0xf]
    %v317 = vld [vmem:[#allocation8 + $0x48] sm:$0xf]
    %v318 = vld [vmem:[#allocation8 + $0x4c] sm:$0xf]
    %v319 = vld [vmem:[#allocation8 + $0x50] sm:$0xf]
    %v320 = vld [vmem:[#allocation8 + $0x54] sm:$0xf]
    %v321 = vld [vmem:[#allocation8 + $0x58] sm:$0xf]
    %v322 = vld [vmem:[#allocation8 + $0x5c] sm:$0xf]
    %v323 = vld [vmem:[#allocation8 + $0x60] sm:$0xf]
    %v324 = vld [vmem:[#allocation8 + $0x64] sm:$0xf]
    %v325 = vld [vmem:[#allocation8 + $0x68] sm:$0xf]
    %v326 = vld [vmem:[#allocation8 + $0x6c] sm:$0xf]
    %v327 = vld [vmem:[#allocation8 + $0x70] sm:$0xf]
    %v328 = vld [vmem:[#allocation8 + $0x74] sm:$0xf]
    %v329 = vld [vmem:[#allocation8 + $0x78] sm:$0xf]
    %v330 = vld [vmem:[#allocation8 + $0x7c] sm:$0xf]
    %v363 = vunpack.c.l.b16 %v299
    %v364 = vunpack.c.l.b16 %v300
    %v365 = vunpack.c.l.b16 %v301
    %v366 = vunpack.c.l.b16 %v302
    %v367 = vunpack.c.l.b16 %v303
    %v368 = vunpack.c.l.b16 %v304
    %v369 = vunpack.c.l.b16 %v305
    %v370 = vunpack.c.l.b16 %v306
    %v371 = vunpack.c.l.b16 %v307
    %v372 = vunpack.c.l.b16 %v308
    %v373 = vunpack.c.l.b16 %v309
    %v374 = vunpack.c.l.b16 %v310
    %v375 = vunpack.c.l.b16 %v311
    %v376 = vunpack.c.l.b16 %v312
    %v377 = vunpack.c.l.b16 %v313
    %v378 = vunpack.c.l.b16 %v314
    %v379 = vunpack.c.l.b16 %v315
    %v380 = vunpack.c.l.b16 %v316
    %v381 = vunpack.c.l.b16 %v317
    %v382 = vunpack.c.l.b16 %v318
    %v383 = vunpack.c.l.b16 %v319
    %v384 = vunpack.c.l.b16 %v320
    %v385 = vunpack.c.l.b16 %v321
    %v386 = vunpack.c.l.b16 %v322
    %v387 = vunpack.c.l.b16 %v323
    %v388 = vunpack.c.l.b16 %v324
    %v389 = vunpack.c.l.b16 %v325
    %v390 = vunpack.c.l.b16 %v326
    %v391 = vunpack.c.l.b16 %v327
    %v392 = vunpack.c.l.b16 %v328
    %v393 = vunpack.c.l.b16 %v329
    %v394 = vunpack.c.l.b16 %v330
    %v395 = vpack.c.b16 %v364, %v363
    %v396 = vpack.c.b16 %v366, %v365
    %v397 = vpack.c.b16 %v368, %v367
    %v398 = vpack.c.b16 %v370, %v369
    %v399 = vpack.c.b16 %v372, %v371
    %v400 = vpack.c.b16 %v374, %v373
    %v401 = vpack.c.b16 %v376, %v375
    %v402 = vpack.c.b16 %v378, %v377
    %v403 = vpack.c.b16 %v380, %v379
    %v404 = vpack.c.b16 %v382, %v381
    %v405 = vpack.c.b16 %v384, %v383
    %v406 = vpack.c.b16 %v386, %v385
    %v407 = vpack.c.b16 %v388, %v387
    %v408 = vpack.c.b16 %v390, %v389
    %v409 = vpack.c.b16 %v392, %v391
    %v410 = vpack.c.b16 %v394, %v393
    %427 = vmatprep.subr.bf16.mxu0 0
    %428 = vmatpush1.bf16.msra.mxu0 %v395
    %429 = vmatprep.subr.bf16.mxu0 0
    %430 = vmatpush1.bf16.msra.mxu0 %v396
    %431 = vmatprep.subr.bf16.mxu0 0
    %432 = vmatpush1.bf16.msra.mxu0 %v397
    %433 = vmatprep.subr.bf16.mxu0 0
    %434 = vmatpush1.bf16.msra.mxu0 %v398
    %435 = vmatprep.subr.bf16.mxu0 0
    %436 = vmatpush1.bf16.msra.mxu0 %v399
    %437 = vmatprep.subr.bf16.mxu0 0
    %438 = vmatpush1.bf16.msra.mxu0 %v400
    %439 = vmatprep.subr.bf16.mxu0 0
    %440 = vmatpush1.bf16.msra.mxu0 %v401
    %441 = vmatprep.subr.bf16.mxu0 0
    %442 = vmatpush1.bf16.msra.mxu0 %v402
    %443 = vmatprep.subr.bf16.mxu0 0
    %444 = vmatpush1.bf16.msra.mxu0 %v403
    %445 = vmatprep.subr.bf16.mxu0 0
    %446 = vmatpush1.bf16.msra.mxu0 %v404
    %447 = vmatprep.subr.bf16.mxu0 0
    %448 = vmatpush1.bf16.msra.mxu0 %v405
    %449 = vmatprep.subr.bf16.mxu0 0
    %450 = vmatpush1.bf16.msra.mxu0 %v406
    %451 = vmatprep.subr.bf16.mxu0 0
    %452 = vmatpush1.bf16.msra.mxu0 %v407
    %453 = vmatprep.subr.bf16.mxu0 0
    %454 = vmatpush1.bf16.msra.mxu0 %v408
    %455 = vmatprep.subr.bf16.mxu0 0
    %456 = vmatpush1.bf16.msra.mxu0 %v409
    %457 = vmatprep.subr.bf16.mxu0 0
    %458 = vmatpush1.bf16.msra.mxu0 %v410
    %459 = vmatprep.mubr.bf16.mxu0 %v298
    %460 = vmatmul.mubr.bf16.gmra.mrb[0].mxu0 %v297
    %v461 = vpop.f32.mrb[0].mxu0
    %v462 = vadd.f32 %v94, %v461
    %v463 = vpop.f32.mrb[0].mxu0
    %v464 = vpop.f32.mrb[0].mxu0
    %v465 = vpop.f32.mrb[0].mxu0
    %466 = vdwg.mxu0
    %v467 = vmax.f32 %v462, 0.0
    %v468 = vpack.c.bf16 %v467, %v467
    %v469 = vld [vmem:[#allocation10] sm:$0xf]
    %v470 = vld [vmem:[#allocation10 + $0x4] sm:$0xf]
    %v471 = vld [vmem:[#allocation10 + $0x8] sm:$0xf]
    %v472 = vld [vmem:[#allocation10 + $0xc] sm:$0xf]
    %v473 = vld [vmem:[#allocation10 + $0x10] sm:$0xf]
    %v474 = vld [vmem:[#allocation10 + $0x14] sm:$0xf]
    %v475 = vld [vmem:[#allocation10 + $0x18] sm:$0xf]
    %v476 = vld [vmem:[#allocation10 + $0x1c] sm:$0xf]
    %v477 = vld [vmem:[#allocation10 + $0x20] sm:$0xf]
    %v478 = vld [vmem:[#allocation10 + $0x24] sm:$0xf]
    %v479 = vld [vmem:[#allocation10 + $0x28] sm:$0xf]
    %v480 = vld [vmem:[#allocation10 + $0x2c] sm:$0xf]
    %v481 = vld [vmem:[#allocation10 + $0x30] sm:$0xf]
    %v482 = vld [vmem:[#allocation10 + $0x34] sm:$0xf]
    %v483 = vld [vmem:[#allocation10 + $0x38] sm:$0xf]
    %v484 = vld [vmem:[#allocation10 + $0x3c] sm:$0xf]
    %v501 = vunpack.c.l.b16 %v469
    %v502 = vunpack.c.l.b16 %v470
    %v503 = vunpack.c.l.b16 %v471
    %v504 = vunpack.c.l.b16 %v472
    %v505 = vunpack.c.l.b16 %v473
    %v506 = vunpack.c.l.b16 %v474
    %v507 = vunpack.c.l.b16 %v475
    %v508 = vunpack.c.l.b16 %v476
    %v509 = vunpack.c.l.b16 %v477
    %v510 = vunpack.c.l.b16 %v478
    %v511 = vunpack.c.l.b16 %v479
    %v512 = vunpack.c.l.b16 %v480
    %v513 = vunpack.c.l.b16 %v481
    %v514 = vunpack.c.l.b16 %v482
    %v515 = vunpack.c.l.b16 %v483
    %v516 = vunpack.c.l.b16 %v484
    %v517 = vpack.c.b16 %v502, %v501
    %v518 = vpack.c.b16 %v504, %v503
    %v519 = vpack.c.b16 %v506, %v505
    %v520 = vpack.c.b16 %v508, %v507
    %v521 = vpack.c.b16 %v510, %v509
    %v522 = vpack.c.b16 %v512, %v511
    %v523 = vpack.c.b16 %v514, %v513
    %v524 = vpack.c.b16 %v516, %v515
    %533 = vmatprep.subr.bf16.mxu0 0
    %534 = vmatpush1.bf16.msra.mxu0 %v517
    %535 = vmatprep.subr.bf16.mxu0 0
    %536 = vmatpush1.bf16.msra.mxu0 %v518
    %537 = vmatprep.subr.bf16.mxu0 0
    %538 = vmatpush1.bf16.msra.mxu0 %v519
    %539 = vmatprep.subr.bf16.mxu0 0
    %540 = vmatpush1.bf16.msra.mxu0 %v520
    %541 = vmatprep.subr.bf16.mxu0 0
    %542 = vmatpush1.bf16.msra.mxu0 %v521
    %543 = vmatprep.subr.bf16.mxu0 0
    %544 = vmatpush1.bf16.msra.mxu0 %v522
    %545 = vmatprep.subr.bf16.mxu0 0
    %546 = vmatpush1.bf16.msra.mxu0 %v523
    %547 = vmatprep.subr.bf16.mxu0 0
    %548 = vmatpush1.bf16.msra.mxu0 %v524
    %549 = vmatprep.subr.bf16.mxu0 0
    %550 = vmatpush1.bf16.msra.mxu0 0
    %551 = vmatprep.subr.bf16.mxu0 0
    %552 = vmatpush1.bf16.msra.mxu0 0
    %553 = vmatprep.subr.bf16.mxu0 0
    %554 = vmatpush1.bf16.msra.mxu0 0
    %555 = vmatprep.subr.bf16.mxu0 0
    %556 = vmatpush1.bf16.msra.mxu0 0
    %557 = vmatprep.subr.bf16.mxu0 0
    %558 = vmatpush1.bf16.msra.mxu0 0
    %559 = vmatprep.subr.bf16.mxu0 0
    %560 = vmatpush1.bf16.msra.mxu0 0
    %561 = vmatprep.subr.bf16.mxu0 0
    %562 = vmatpush1.bf16.msra.mxu0 0
    %563 = vmatprep.subr.bf16.mxu0 0
    %564 = vmatpush1.bf16.msra.mxu0 0
    %565 = vmatprep.mubr.bf16.mxu0 0
    %566 = vmatmul.mubr.bf16.gmra.mrb[0].mxu0 %v468
    %v567 = vpop.f32.mrb[0].mxu0
    %v568 = vadd.f32 %v95, %v567
    %v569 = vpop.f32.mrb[0].mxu0
    %v570 = vpop.f32.mrb[0].mxu0
    %v571 = vpop.f32.mrb[0].mxu0
    %572 = vdwg.mxu0
    %vm573 = vcmask 25600
    %574 = vst.msk [vmem:[#allocation11] sm:$0x3] %vm573, %v568
    // Predicated region
    $region46: #{_dqn_pallas.1} parent=1 // pred_check
      _
    $region47: #{_dqn_pallas.1} parent=1 // pred_check_branch
      %576 = sbr.rel (0) target = $region49
    $region48: #{_dqn_pallas.1} parent=1 // pred_region
      %s578 = ssub.s32 32, 32
      %579 = vsyncadd [#allocation4], %s578
      %s581 = sshll.u32 [#allocation11], 4
      %s582 = int_to_ptr.vmem [resolvable:$true] %s581
      %584 = dma.vmem_to_hbm [thread:$0]  %s582, 32, %s6, [#allocation4]
    $region49: #{_dqn_pallas.1} parent=1 // pred_fallthru
      _
    // Predicated region
    $region50: #{_dqn_pallas.1} parent=1 // pred_check
      _
    $region51: #{_dqn_pallas.1} parent=1 // pred_check_branch
      %586 = sbr.rel (0) target = $region53
    $region52: #{_dqn_pallas.1} parent=1 // pred_region
      %587 = dma.done [#allocation4], 32
    $region53: #{_dqn_pallas.1} parent=1 // pred_fallthru
      _
    %588 = vsyncpa [#allocation3], 1
    %589 = vsyncpa [#allocation6], 1
    %590 = vsyncpa [#allocation9], 1
    %591 = vsyncpa [#allocation4], 1

</llo_original>
